<compile_context>
chip_gen: v7x
topology: tpu7x:2x2x1
jax: 0.10.0
libtpu: 0.0.40
codegen_flags: <defaults>
</compile_context>

<pallas_src>
import functools

import jax
import jax.numpy as jnp
from jax import lax
from jax.experimental import pallas as pl
from jax.experimental.pallas import tpu as pltpu


def summerize_kernel(x_ref, p_ref, o_ref, *, k: int):
    # x_ref: (Bb, C, N) channels-first node features (nodes on the 128-lane dim)
    # p_ref: (C, 1)     learned projection vector (shared across the grid)
    # o_ref: (Bb, k, C) gathered + tanh-scaled rows (descending by score)
    xv = x_ref[...]                                     # native dtype, no f32 block copy
    p = p_ref[...].astype(jnp.float32)                  # (C, 1), tiny
    bb, c, n = xv.shape

    inv_norm = lax.rsqrt(jnp.sum(p * p))                # EUP rsqrt; avoids a divide

    # Score per node: multiply in the input dtype on the VPU, accumulate the
    # channel (sublane) reduction in f32, then scale by 1/||p||.
    prod = xv * p.astype(xv.dtype)[None]                # (Bb, C, N)
    y = jnp.sum(prod, axis=1, dtype=jnp.float32) * inv_norm      # (Bb, N) f32

    lane_ids = lax.broadcasted_iota(jnp.int32, (bb, n), 1)
    neg_inf = jnp.float32(-jnp.inf)

    # Iterative top-k over the small (Bb, N) score array only. k is small & static,
    # so a Python loop of max / first-index / mask reproduces torch.topk ordering
    # (largest, descending, first occurrence on ties).
    # NOTE: max + min-of-index stay as two lane reductions; packing score+index
    # into one 32-bit sort key would lose score precision.
    y_work = y
    idx_cols = []
    val_cols = []
    for _ in range(k):
        m = jnp.max(y_work, axis=-1, keepdims=True)                            # (Bb, 1)
        is_max = y_work == m
        idx = jnp.min(jnp.where(is_max, lane_ids, n), axis=-1, keepdims=True)  # (Bb, 1)
        idx_cols.append(idx)
        val_cols.append(m)
        y_work = jnp.where(lane_ids == idx, neg_inf, y_work)

    # Gather the k selected node columns with masked lane reductions off the
    # resident block (exact: each reduction sums one real value plus zeros), and
    # apply the deferred tanh scaling to those k rows only (k*C work, not N*C).
    # TODO(synk): for large static k (>=128) a bf16 one-hot MXU gather would fill
    # MXU rows better than k masked reductions.
    pieces = []
    for j in range(k):
        sel = lane_ids == idx_cols[j]                                          # (Bb, N)
        row = jnp.sum(jnp.where(sel[:, None, :], xv, 0),
                      axis=-1, dtype=jnp.float32)                              # (Bb, C)
        pieces.append(row * jnp.tanh(val_cols[j]))
    out = jnp.stack(pieces, axis=1)                                            # (Bb, k, C)
    o_ref[...] = out.astype(o_ref.dtype)                                       # single store


def summerize(inputs: jax.Array, p: jax.Array, k: int,
              *, target_block_bytes: int = 2 << 20) -> jax.Array:
    """inputs: (B, N, C), p: (C,) -> (B, k, C)."""
    B, N, C = inputs.shape
    if k > N:
        raise ValueError(f"shrink_k={k} must be <= number of nodes N={N}")

    # Lane-dense layout: nodes on the minor dim (typical GCN C << 128).
    x_cf = jnp.swapaxes(inputs, 1, 2)                  # (B, C, N)
    p2 = p.reshape(C, 1)

    # Batch block sized toward ~target_block_bytes of VMEM-padded input per grid
    # step (sublane pad to 8, lane pad to 128), keeping >= min(8, B) grid steps so
    # multi-TensorCore parts (v7x) get several steps per core.  bb need not divide
    # B: grid = cdiv(B, bb), out-of-range output rows are dropped, and padded tail
    # inputs are never used to index memory, so garbage there is harmless.
    itemsize = jnp.dtype(inputs.dtype).itemsize
    per_batch = (-(-C // 8) * 8) * (-(-N // 128) * 128) * itemsize
    bb = max(1, min(B, target_block_bytes // max(1, per_batch)))
    if B >= 2:
        bb = min(bb, max(1, B // min(8, B)))
    bb = int(bb)
    grid = (pl.cdiv(B, bb),)

    cost = pl.CostEstimate(
        flops=2 * B * N * C * (1 + k),
        transcendentals=B * k + 1,
        bytes_accessed=B * N * C * itemsize + B * k * C * itemsize + C * 4,
    )

    kernel = functools.partial(summerize_kernel, k=k)
    return pl.pallas_call(
        kernel,
        out_shape=jax.ShapeDtypeStruct((B, k, C), inputs.dtype),
        grid_spec=pltpu.PrefetchScalarGridSpec(
            num_scalar_prefetch=0,
            grid=grid,
            in_specs=[
                pl.BlockSpec((bb, C, N), lambda b: (b, 0, 0)),   # channels-first batch block
                pl.BlockSpec((C, 1), lambda b: (0, 0)),          # shared parameter p
            ],
            out_specs=pl.BlockSpec((bb, k, C), lambda b: (b, 0, 0)),
        ),
        compiler_params=pltpu.CompilerParams(dimension_semantics=("parallel",)),
        cost_estimate=cost,
    )(x_cf, p2)


def summerize_ref(inputs, p, k):
    # Pure-JAX reference mirroring the torch forward.
    y = jnp.einsum("bnc,c->bn", inputs, p) / jnp.linalg.norm(p)
    x = inputs * jnp.tanh(y)[..., None]
    top_idx = lax.top_k(y, k)[1]                         # (B, k), descending
    return jnp.take_along_axis(x, top_idx[..., None], axis=1)


if __name__ == "__main__":
    B, N, C = 2, 16, 8        # batch, nodes, in_channel
    K = 4                     # shrink_k

    key = jax.random.PRNGKey(0)
    k_x, k_p = jax.random.split(key)
    inputs = jax.random.normal(k_x, (B, N, C), dtype=jnp.float32)
    # Deterministic parameter init (module's reset_parameters uses uniform(in_channel, p)).
    bound = 1.0 / jnp.sqrt(jnp.float32(C))
    p = jax.random.uniform(k_p, (C,), dtype=jnp.float32, minval=-bound, maxval=bound)

    out = summerize(inputs, p, K)
    out = jax.block_until_ready(out)

    ref = summerize_ref(inputs, p, K)
    assert out.shape == (B, K, C)
    assert jnp.allclose(out, ref, atol=1e-5, rtol=1e-5), "mismatch vs. pure-JAX reference"

    print("KERNEL_OK")
</pallas_src>

<mosaic_0001>
module attributes {stable_mosaic.version = 11 : i64} {
  func.func @summerize_kernel(%arg0: i32, %arg1: memref<1x8x16xf32, #tpu.memory_space<vmem>>, %arg2: memref<8x1xf32, #tpu.memory_space<vmem>>, %arg3: memref<1x4x8xf32, #tpu.memory_space<vmem>>) attributes {dimension_semantics = [#tpu.dimension_semantics<parallel>], iteration_bounds = array<i64: 2>, scalar_prefetch = 0 : i64, scratch_operands = 0 : i64, tpu.core_type = #tpu.core_type<tc>, window_params = [{transform_indices = @transform_0, window_bounds = array<i64: 1, 8, 16>}, {pipeline_mode = #tpu.pipeline_mode<synchronous>, transform_indices = @transform_1, window_bounds = array<i64: 8, 1>}, {transform_indices = @transform_2, window_bounds = array<i64: 1, 4, 8>}]} {
    %c0 = arith.constant 0 : index
    %c0_0 = arith.constant 0 : index
    %c0_1 = arith.constant 0 : index
    %0 = vector.load %arg1[%c0, %c0_0, %c0_1] : memref<1x8x16xf32, #tpu.memory_space<vmem>>, vector<1x8x16xf32>
    %c0_2 = arith.constant 0 : index
    %c0_3 = arith.constant 0 : index
    %1 = vector.load %arg2[%c0_2, %c0_3] : memref<8x1xf32, #tpu.memory_space<vmem>>, vector<8x1xf32>
    %2 = arith.mulf %1, %1 : vector<8x1xf32>
    %3 = vector.shape_cast %2 : vector<8x1xf32> to vector<1x8x1xf32>
    %cst = arith.constant dense<0.000000e+00> : vector<1xf32>
    %4 = vector.multi_reduction <add>, %3, %cst [1, 2] : vector<1x8x1xf32> to vector<1xf32>
    %5 = vector.shape_cast %4 : vector<1xf32> to vector<1x1x1xf32>
    %6 = vector.extract %5[0, 0, 0] : f32 from vector<1x1x1xf32>
    %7 = math.rsqrt %6 : f32
    %8 = vector.shape_cast %1 : vector<8x1xf32> to vector<1x8x1xf32>
    %9 = vector.broadcast %8 : vector<1x8x1xf32> to vector<1x8x16xf32>
    %10 = arith.mulf %0, %9 : vector<1x8x16xf32>
    %cst_4 = arith.constant dense<0.000000e+00> : vector<1x16xf32>
    %11 = vector.multi_reduction <add>, %10, %cst_4 [1] : vector<1x8x16xf32> to vector<1x16xf32>
    %12 = vector.broadcast %7 : f32 to vector<1x16xf32>
    %13 = arith.mulf %11, %12 : vector<1x16xf32>
    %14 = tpu.iota {dimensions = array<i32: 1>} : vector<1x16xi32>
    %cst_5 = arith.constant dense<0xFF800000> : vector<1xf32>
    %15 = vector.multi_reduction <maximumf>, %13, %cst_5 [1] : vector<1x16xf32> to vector<1xf32>
    %16 = vector.shape_cast %15 : vector<1xf32> to vector<1x1xf32>
    %17 = vector.broadcast %16 : vector<1x1xf32> to vector<1x16xf32>
    %18 = arith.cmpf oeq, %13, %17 : vector<1x16xf32>
    %c16_i32 = arith.constant 16 : i32
    %19 = vector.broadcast %c16_i32 : i32 to vector<1x16xi32>
    %20 = arith.select %18, %14, %19 : vector<1x16xi1>, vector<1x16xi32>
    %cst_6 = arith.constant dense<2147483647> : vector<1xi32>
    %21 = vector.multi_reduction <minsi>, %20, %cst_6 [1] : vector<1x16xi32> to vector<1xi32>
    %22 = vector.shape_cast %21 : vector<1xi32> to vector<1x1xi32>
    %23 = vector.broadcast %22 : vector<1x1xi32> to vector<1x16xi32>
    %24 = arith.cmpi eq, %14, %23 : vector<1x16xi32>
    %cst_7 = arith.constant 0xFF800000 : f32
    %25 = vector.broadcast %cst_7 : f32 to vector<1x16xf32>
    %26 = arith.select %24, %25, %13 : vector<1x16xi1>, vector<1x16xf32>
    %cst_8 = arith.constant dense<0xFF800000> : vector<1xf32>
    %27 = vector.multi_reduction <maximumf>, %26, %cst_8 [1] : vector<1x16xf32> to vector<1xf32>
    %28 = vector.shape_cast %27 : vector<1xf32> to vector<1x1xf32>
    %29 = vector.broadcast %28 : vector<1x1xf32> to vector<1x16xf32>
    %30 = arith.cmpf oeq, %26, %29 : vector<1x16xf32>
    %c16_i32_9 = arith.constant 16 : i32
    %31 = vector.broadcast %c16_i32_9 : i32 to vector<1x16xi32>
    %32 = arith.select %30, %14, %31 : vector<1x16xi1>, vector<1x16xi32>
    %cst_10 = arith.constant dense<2147483647> : vector<1xi32>
    %33 = vector.multi_reduction <minsi>, %32, %cst_10 [1] : vector<1x16xi32> to vector<1xi32>
    %34 = vector.shape_cast %33 : vector<1xi32> to vector<1x1xi32>
    %35 = vector.broadcast %34 : vector<1x1xi32> to vector<1x16xi32>
    %36 = arith.cmpi eq, %14, %35 : vector<1x16xi32>
    %cst_11 = arith.constant 0xFF800000 : f32
    %37 = vector.broadcast %cst_11 : f32 to vector<1x16xf32>
    %38 = arith.select %36, %37, %26 : vector<1x16xi1>, vector<1x16xf32>
    %cst_12 = arith.constant dense<0xFF800000> : vector<1xf32>
    %39 = vector.multi_reduction <maximumf>, %38, %cst_12 [1] : vector<1x16xf32> to vector<1xf32>
    %40 = vector.shape_cast %39 : vector<1xf32> to vector<1x1xf32>
    %41 = vector.broadcast %40 : vector<1x1xf32> to vector<1x16xf32>
    %42 = arith.cmpf oeq, %38, %41 : vector<1x16xf32>
    %c16_i32_13 = arith.constant 16 : i32
    %43 = vector.broadcast %c16_i32_13 : i32 to vector<1x16xi32>
    %44 = arith.select %42, %14, %43 : vector<1x16xi1>, vector<1x16xi32>
    %cst_14 = arith.constant dense<2147483647> : vector<1xi32>
    %45 = vector.multi_reduction <minsi>, %44, %cst_14 [1] : vector<1x16xi32> to vector<1xi32>
    %46 = vector.shape_cast %45 : vector<1xi32> to vector<1x1xi32>
    %47 = vector.broadcast %46 : vector<1x1xi32> to vector<1x16xi32>
    %48 = arith.cmpi eq, %14, %47 : vector<1x16xi32>
    %cst_15 = arith.constant 0xFF800000 : f32
    %49 = vector.broadcast %cst_15 : f32 to vector<1x16xf32>
    %50 = arith.select %48, %49, %38 : vector<1x16xi1>, vector<1x16xf32>
    %cst_16 = arith.constant dense<0xFF800000> : vector<1xf32>
    %51 = vector.multi_reduction <maximumf>, %50, %cst_16 [1] : vector<1x16xf32> to vector<1xf32>
    %52 = vector.shape_cast %51 : vector<1xf32> to vector<1x1xf32>
    %53 = vector.broadcast %52 : vector<1x1xf32> to vector<1x16xf32>
    %54 = arith.cmpf oeq, %50, %53 : vector<1x16xf32>
    %c16_i32_17 = arith.constant 16 : i32
    %55 = vector.broadcast %c16_i32_17 : i32 to vector<1x16xi32>
    %56 = arith.select %54, %14, %55 : vector<1x16xi1>, vector<1x16xi32>
    %cst_18 = arith.constant dense<2147483647> : vector<1xi32>
    %57 = vector.multi_reduction <minsi>, %56, %cst_18 [1] : vector<1x16xi32> to vector<1xi32>
    %58 = vector.shape_cast %57 : vector<1xi32> to vector<1x1xi32>
    %59 = vector.broadcast %22 : vector<1x1xi32> to vector<1x16xi32>
    %60 = arith.cmpi eq, %14, %59 : vector<1x16xi32>
    %61 = vector.shape_cast %60 : vector<1x16xi1> to vector<1x1x16xi1>
    %c0_i32 = arith.constant 0 : i32
    %62 = arith.sitofp %c0_i32 : i32 to f32
    %63 = vector.shape_cast %61 : vector<1x1x16xi1> to vector<1x1x16xi1>
    %64 = vector.broadcast %63 : vector<1x1x16xi1> to vector<1x8x16xi1>
    %65 = vector.broadcast %62 : f32 to vector<1x8x16xf32>
    %66 = arith.select %64, %0, %65 : vector<1x8x16xi1>, vector<1x8x16xf32>
    %cst_19 = arith.constant dense<0.000000e+00> : vector<1x8xf32>
    %67 = vector.multi_reduction <add>, %66, %cst_19 [2] : vector<1x8x16xf32> to vector<1x8xf32>
    %68 = math.tanh %16 : vector<1x1xf32>
    %69 = vector.broadcast %68 : vector<1x1xf32> to vector<1x8xf32>
    %70 = arith.mulf %67, %69 : vector<1x8xf32>
    %71 = vector.broadcast %34 : vector<1x1xi32> to vector<1x16xi32>
    %72 = arith.cmpi eq, %14, %71 : vector<1x16xi32>
    %73 = vector.shape_cast %72 : vector<1x16xi1> to vector<1x1x16xi1>
    %c0_i32_20 = arith.constant 0 : i32
    %74 = arith.sitofp %c0_i32_20 : i32 to f32
    %75 = vector.shape_cast %73 : vector<1x1x16xi1> to vector<1x1x16xi1>
    %76 = vector.broadcast %75 : vector<1x1x16xi1> to vector<1x8x16xi1>
    %77 = vector.broadcast %74 : f32 to vector<1x8x16xf32>
    %78 = arith.select %76, %0, %77 : vector<1x8x16xi1>, vector<1x8x16xf32>
    %cst_21 = arith.constant dense<0.000000e+00> : vector<1x8xf32>
    %79 = vector.multi_reduction <add>, %78, %cst_21 [2] : vector<1x8x16xf32> to vector<1x8xf32>
    %80 = math.tanh %28 : vector<1x1xf32>
    %81 = vector.broadcast %80 : vector<1x1xf32> to vector<1x8xf32>
    %82 = arith.mulf %79, %81 : vector<1x8xf32>
    %83 = vector.broadcast %46 : vector<1x1xi32> to vector<1x16xi32>
    %84 = arith.cmpi eq, %14, %83 : vector<1x16xi32>
    %85 = vector.shape_cast %84 : vector<1x16xi1> to vector<1x1x16xi1>
    %c0_i32_22 = arith.constant 0 : i32
    %86 = arith.sitofp %c0_i32_22 : i32 to f32
    %87 = vector.shape_cast %85 : vector<1x1x16xi1> to vector<1x1x16xi1>
    %88 = vector.broadcast %87 : vector<1x1x16xi1> to vector<1x8x16xi1>
    %89 = vector.broadcast %86 : f32 to vector<1x8x16xf32>
    %90 = arith.select %88, %0, %89 : vector<1x8x16xi1>, vector<1x8x16xf32>
    %cst_23 = arith.constant dense<0.000000e+00> : vector<1x8xf32>
    %91 = vector.multi_reduction <add>, %90, %cst_23 [2] : vector<1x8x16xf32> to vector<1x8xf32>
    %92 = math.tanh %40 : vector<1x1xf32>
    %93 = vector.broadcast %92 : vector<1x1xf32> to vector<1x8xf32>
    %94 = arith.mulf %91, %93 : vector<1x8xf32>
    %95 = vector.broadcast %58 : vector<1x1xi32> to vector<1x16xi32>
    %96 = arith.cmpi eq, %14, %95 : vector<1x16xi32>
    %97 = vector.shape_cast %96 : vector<1x16xi1> to vector<1x1x16xi1>
    %c0_i32_24 = arith.constant 0 : i32
    %98 = arith.sitofp %c0_i32_24 : i32 to f32
    %99 = vector.shape_cast %97 : vector<1x1x16xi1> to vector<1x1x16xi1>
    %100 = vector.broadcast %99 : vector<1x1x16xi1> to vector<1x8x16xi1>
    %101 = vector.broadcast %98 : f32 to vector<1x8x16xf32>
    %102 = arith.select %100, %0, %101 : vector<1x8x16xi1>, vector<1x8x16xf32>
    %cst_25 = arith.constant dense<0.000000e+00> : vector<1x8xf32>
    %103 = vector.multi_reduction <add>, %102, %cst_25 [2] : vector<1x8x16xf32> to vector<1x8xf32>
    %104 = math.tanh %52 : vector<1x1xf32>
    %105 = vector.broadcast %104 : vector<1x1xf32> to vector<1x8xf32>
    %106 = arith.mulf %103, %105 : vector<1x8xf32>
    %107 = vector.shape_cast %70 : vector<1x8xf32> to vector<1x1x8xf32>
    %108 = vector.shape_cast %82 : vector<1x8xf32> to vector<1x1x8xf32>
    %109 = vector.shape_cast %94 : vector<1x8xf32> to vector<1x1x8xf32>
    %110 = vector.shape_cast %106 : vector<1x8xf32> to vector<1x1x8xf32>
    %111 = tpu.concatenate %107, %108, %109, %110 in 1 : vector<1x1x8xf32>, vector<1x1x8xf32>, vector<1x1x8xf32>, vector<1x1x8xf32> -> vector<1x4x8xf32>
    %c0_26 = arith.constant 0 : index
    %c0_27 = arith.constant 0 : index
    %c0_28 = arith.constant 0 : index
    %112 = vector.load %arg3[%c0_26, %c0_27, %c0_28] : memref<1x4x8xf32, #tpu.memory_space<vmem>>, vector<1x4x8xf32>
    tpu.vector_store %arg3[%c0_26, %c0_27, %c0_28], %111 {strides = array<i32>} : memref<1x4x8xf32, #tpu.memory_space<vmem>>, vector<1x4x8xf32>,
    return
  }
  func.func @transform_0(%arg0: i32) -> (i32, i32, i32) {
    %c0_i32 = arith.constant 0 : i32
    %c0_i32_0 = arith.constant 0 : i32
    %c0_i32_1 = arith.constant 0 : i32
    return %arg0, %c0_i32, %c0_i32_0 : i32, i32, i32
  }
  func.func @transform_1(%arg0: i32) -> (i32, i32) {
    %c0_i32 = arith.constant 0 : i32
    %c0_i32_0 = arith.constant 0 : i32
    %c0_i32_1 = arith.constant 0 : i32
    return %c0_i32, %c0_i32_0 : i32, i32
  }
  func.func @transform_2(%arg0: i32) -> (i32, i32, i32) {
    %c0_i32 = arith.constant 0 : i32
    %c0_i32_0 = arith.constant 0 : i32
    %c0_i32_1 = arith.constant 0 : i32
    return %arg0, %c0_i32, %c0_i32_0 : i32, i32, i32
  }
}

</mosaic_0001>

<llo_original>
// kernel: tpu_custom_call.1
$region0: #{tpu_custom_call.1}
  #allocation0 [shape = 'u32[]', space=smem, size = 0x4, offset = 0x4, fixed_abs, tag = 'smem constant byte address 0x4 - core index']
  #allocation1 [shape = 'u32[144,128]{1,0:T(1,128)}', space=vmem, size = 0x12000, scoped, tag = 'internal scratch']
  %s0 = inlined_call_operand.hbm [shape: f32[2,8,16], index: 0, kind: input, shape index: {}]
  %s1 = inlined_call_operand.vmem [shape: f32[8,1], index: 1, kind: input, shape index: {}]
  %s2 = inlined_call_operand.hbm [shape: f32[2,4,8], index: 2, kind: output, shape index: {}]
  %s3 = sld [smem:[#allocation0]]
  $region45: #{tpu_custom_call.1} parent=0
    _
  %s5 = ssub.s32 1, %s3
  %s6 = scalar_select 0, %s5, %s3
  $region1: #{tpu_custom_call.1} parent=0
    #allocation2 [shape = 'u8[8192]{0}', space=vmem, size = 0x2000, scoped, tag = 'input window, operand 0']
    #allocation3 [shape = 's32[2]{0}', space=sflag, size = 0x8, scoped, tag = 'scoped memory for tpu_custom_call.1']
    #allocation4 [shape = 's32[2]{0}', space=sflag, size = 0x8, scoped, tag = 'scoped memory for tpu_custom_call.1']
    #allocation5 [shape = 'u8[4096]{0}', space=vmem, size = 0x1000, scoped, tag = 'output window, operand 0']
    %7 = vsyncpa [#allocation3], 0
    %s8 = scalar_lea.sflag [#allocation3], 1
    %9 = vsyncpa %s8, 0
    %10 = vsyncpa [#allocation4], 0
    %s11 = scalar_lea.sflag [#allocation4], 1
    %12 = vsyncpa %s11, 0
    loop: start=0, step=1, limit=4
    $region2: #{tpu_custom_call.1} parent=1 // loop_pre_header
      _
    $region3: #{tpu_custom_call.1} parent=1 // loop_header
      %s14 = sphi 0, %s18
      %p15 = scmp.ge.s32.totalorder %s14, 4
      %s24 = sphi 0, %s26
      %s27 = sphi 0, %s24
      %s28 = sphi 0, %s27
      %s44 = sphi 0, %s28
      %s48 = sphi 0, %s48
      %s50 = sphi 0, %s48
      %s51 = sphi 0, %s50
      %s65 = sphi 0, %s51
      %s71 = sphi 0, %s73
      %s74 = sphi 0, %s71
      %s75 = sphi 0, %s74
      %s91 = sphi 0, %s75
    $region4: #{tpu_custom_call.1} parent=1 // loop_header_branch
      %17 = sbr.rel (%p15) target = $region8
    $region5: #{tpu_custom_call.1} parent=1 // loop_body
      %s19 = ssub.s32 %s14, 1
      %s20 = ssub.s32 %s14, 2
      %s21 = sadd.s32 %s14, 1
      %s22 = ssub.s32 %s14, %s21
      %p23 = scmp.eq.s32.totalorder %s22, 0
      %s25 = sadd.s32 %s24, 1
      %s26 = scalar_select %p23, %s24, %s25
      %p29 = pneg %p23
      %p30 = scmp.eq.s32.totalorder %s14, 1
      %p31 = por %p29, %p30
      %p32 = scmp.ne.s32.totalorder %s24, %s27
      %p33 = scmp.eq.s32.totalorder %s14, 0
      %p34 = por %p32, %p33
      %p35 = scmp.ne.s32.totalorder %s24, %s27
      %p36 = scmp.eq.s32.totalorder %s19, 1
      %p37 = por %p35, %p36
      %p38 = scmp.ne.s32.totalorder %s27, %s28
      %p39 = scmp.eq.s32.totalorder %s19, 0
      %p40 = por %p38, %p39
      %p41 = scmp.ne.s32.totalorder %s27, %s28
      %p42 = scmp.eq.s32.totalorder %s20, 1
      %p43 = por %p41, %p42
      %p45 = scmp.ne.s32.totalorder %s28, %s44
      %p46 = scmp.eq.s32.totalorder %s20, 0
      %p47 = por %p45, %p46
      %s49 = sadd.s32 %s48, 1
      %p52 = scmp.eq.s32.totalorder %s14, 1
      %p53 = scmp.ne.s32.totalorder %s48, %s50
      %p54 = scmp.eq.s32.totalorder %s14, 0
      %p55 = por %p53, %p54
      %p56 = scmp.ne.s32.totalorder %s48, %s50
      %p57 = scmp.eq.s32.totalorder %s19, 1
      %p58 = por %p56, %p57
      %p59 = scmp.ne.s32.totalorder %s50, %s51
      %p60 = scmp.eq.s32.totalorder %s19, 0
      %p61 = por %p59, %p60
      %p62 = scmp.ne.s32.totalorder %s50, %s51
      %p63 = scmp.eq.s32.totalorder %s20, 1
      %p64 = por %p62, %p63
      %p66 = scmp.ne.s32.totalorder %s51, %s65
      %p67 = scmp.eq.s32.totalorder %s20, 0
      %p68 = por %p66, %p67
      %s69 = ssub.s32 %s14, %s21
      %p70 = scmp.eq.s32.totalorder %s69, 0
      %s72 = sadd.s32 %s71, 1
      %s73 = scalar_select %p70, %s71, %s72
      %p76 = pneg %p70
      %p77 = scmp.eq.s32.totalorder %s14, 1
      %p78 = por %p76, %p77
      %p79 = scmp.ne.s32.totalorder %s71, %s74
      %p80 = scmp.eq.s32.totalorder %s14, 0
      %p81 = por %p79, %p80
      %p82 = scmp.ne.s32.totalorder %s71, %s74
      %p83 = scmp.eq.s32.totalorder %s19, 1
      %p84 = por %p82, %p83
      %p85 = scmp.ne.s32.totalorder %s74, %s75
      %p86 = scmp.eq.s32.totalorder %s19, 0
      %p87 = por %p85, %p86
      %p88 = scmp.ne.s32.totalorder %s74, %s75
      %p89 = scmp.eq.s32.totalorder %s20, 1
      %p90 = por %p88, %p89
      %p92 = scmp.ne.s32.totalorder %s75, %s91
      %p93 = scmp.eq.s32.totalorder %s20, 0
      %p94 = por %p92, %p93
      %p95 = scmp.le.s32.totalorder 1, %s14
      %p96 = scmp.lt.s32.totalorder %s14, 3
      %p97 = pnand %p95, %p96
      %p98 = pneg %p97
      // Predicated region
      $region9: #{tpu_custom_call.1} parent=5 // pred_check
        _
      $region10: #{tpu_custom_call.1} parent=5 // pred_check_branch
        %100 = sbr.rel (%p97) target = $region12
      $region11: #{tpu_custom_call.1} parent=5 // pred_region
        %s101 = ssub.s32 %s14, 1
        // Predicated region
        $region13: #{tpu_custom_call.1} parent=11 // pred_check
          %p102 = pneg %p61
        $region14: #{tpu_custom_call.1} parent=11 // pred_check_branch
          %104 = sbr.rel (%p102) target = $region16
        $region15: #{tpu_custom_call.1} parent=11 // pred_region
          _
        $region16: #{tpu_custom_call.1} parent=11 // pred_fallthru
          _
      $region12: #{tpu_custom_call.1} parent=5 // pred_fallthru
        _
      %p105 = scmp.lt.s32.totalorder %s14, 2
      // Predicated region
      $region17: #{tpu_custom_call.1} parent=5 // pred_check
        %p106 = pneg %p105
      $region18: #{tpu_custom_call.1} parent=5 // pred_check_branch
        %108 = sbr.rel (%p106) target = $region20
      $region19: #{tpu_custom_call.1} parent=5 // pred_region
        // Predicated region
        $region21: #{tpu_custom_call.1} parent=19 // pred_check
          %p109 = pneg %p34
        $region22: #{tpu_custom_call.1} parent=19 // pred_check_branch
          %111 = sbr.rel (%p109) target = $region24
        $region23: #{tpu_custom_call.1} parent=19 // pred_region
          %s112 = sand.u32 %s24, 1
          %s113 = scalar_lea.sflag [#allocation3], %s112
          %s114 = sand.u32 %s24, 1
          %s115 = smul.addr %s114, 8
          %s116 = scalar_lea.vmem [#allocation2], %s115
          %s118 = ssub.s32 128, 128
          %119 = vsyncadd %s113, %s118
          %s120 = smul.addr %s14, 128
          %s121 = scalar_lea.hbm %s0, %s120
          %s123 = sshll.u32 %s116, 4
          %s124 = int_to_ptr.vmem [resolvable:$true] %s123
          %126 = dma.hbm_to_vmem [thread:$0]  %s121, 128, %s124, %s113
        $region24: #{tpu_custom_call.1} parent=19 // pred_fallthru
          _
      $region20: #{tpu_custom_call.1} parent=5 // pred_fallthru
        _
      %p127 = scmp.le.s32.totalorder 1, %s14
      %p128 = scmp.lt.s32.totalorder %s14, 3
      %p129 = pnand %p127, %p128
      %p130 = pneg %p129
      // Predicated region
      $region25: #{tpu_custom_call.1} parent=5 // pred_check
        _
      $region26: #{tpu_custom_call.1} parent=5 // pred_check_branch
        %132 = sbr.rel (%p129) target = $region28
      $region27: #{tpu_custom_call.1} parent=5 // pred_region
        %s133 = ssub.s32 %s14, 1
        %s134 = sand.u32 %s27, 1
        %s135 = scalar_lea.sflag [#allocation3], %s134
        %s136 = sand.u32 %s27, 1
        %s137 = smul.addr %s136, 8
        %s138 = scalar_lea.vmem [#allocation2], %s137
        // Predicated region
        $region29: #{tpu_custom_call.1} parent=27 // pred_check
          %p139 = pneg %p40
        $region30: #{tpu_custom_call.1} parent=27 // pred_check_branch
          %141 = sbr.rel (%p139) target = $region32
        $region31: #{tpu_custom_call.1} parent=27 // pred_region
          %142 = dma.done %s135, 128
        $region32: #{tpu_custom_call.1} parent=27 // pred_fallthru
          _
        %s143 = sand.u32 %s27, 1
        %s144 = scalar_lea.sflag [#allocation3], %s143
        %s145 = sand.u32 %s27, 1
        %s146 = smul.addr %s145, 8
        %s147 = scalar_lea.vmem [#allocation2], %s146
        %p148 = pneg %p40
        %p149 = pneg %p37
        %p150 = pneg %p61
        %p151 = pneg %p58
        %p152 = pneg %p87
        %p153 = pneg %p84
        %s154 = sand.u32 %s74, 1
        %s155 = scalar_lea.sflag [#allocation4], %s154
        %s156 = sand.u32 %s74, 1
        %s157 = smul.addr %s156, 4
        %s158 = scalar_lea.vmem [#allocation5], %s157
        %v159 = vld [vmem:[%s138] sm:$0xff]
        %v160 = vld [vmem:[%s1] sm:$0xff]
        %v161 = vmul.f32 %v160, %v160
        %vm162 = vcmask 7168
        %v163 = vsel %vm162, %v161, 0.0
        %164 = vadd.xlane.f32.xlu0 %v163
        %v165 = vpop.xlane.xlu0 %164
        %v166 = vrot.slane %v165, 4
        %v167 = vadd.f32 %v165, %v166
        %v168 = vrot.slane %v167, 2
        %v169 = vadd.f32 %v167, %v168
        %v170 = vrot.slane %v169, 1
        %v171 = vadd.f32 %v169, %v170
        %s172 = vtos %v171
        %v173 = vstv %s172
        %v174 = vrsqrt.pop %v173
        %s175 = vtos %v174
        %177 = vset.pattern.permute.xlu0 0
        %178 = vperm.xlu0 %177, %v160
        %v179 = vpop.permute.xlu0 %178
        %v181 = vmul.f32 %v159, %v179
        %vm182 = vcmask 130048
        %v183 = vsel %vm182, %v181, 0.0
        %v184 = vrot.slane %v183, 4
        %v185 = vadd.f32 %v183, %v184
        %v186 = vrot.slane %v185, 2
        %v187 = vadd.f32 %v185, %v186
        %v188 = vrot.slane %v187, 1
        %v189 = vadd.f32 %v187, %v188
        %v190 = vstv %s175
        %v191 = vmul.f32 %v189, %v190
        %v192 = vlaneseq
        %v193 = vand.u32 %v192, 127
        %v194 = vsel %vm182, %v191, -inf
        %195 = vmax.xlane.f32.xlu0 %v194
        %v196 = vpop.xlane.xlu0 %195
        %vm197 = vcmp.eq.f32.partialorder %v191, %v196
        %v198 = vsel %vm197, %v193, 16
        %v199 = vsel %vm182, %v198, 2147483647
        %v200 = vand.u32 %v199, 65535
        %v201 = vshra.s32 %v199, 16
        %v202 = vcvt.s32.f32 %v200
        %v203 = vcvt.s32.f32 %v201
        %204 = vmin.xlane.f32.xlu0 %v203
        %v205 = vpop.xlane.xlu0 %204
        %vm206 = vcmp.eq.f32.partialorder %v203, %v205
        %v207 = vsel %vm206, %v202, inf
        %208 = vmin.xlane.f32.xlu0 %v207
        %v209 = vpop.xlane.xlu0 %208
        %v210 = vcvt.f32.s32 %v209
        %v211 = vcvt.f32.s32 %v205
        %v212 = vshll.u32 %v211, 16
        %v213 = vadd.s32 %v212, %v210
        %vm214 = vcmp.eq.s32.totalorder %v193, %v213
        %v215 = vsel %vm214, -inf, %v191
        %v216 = vsel %vm182, %v215, -inf
        %217 = vmax.xlane.f32.xlu0 %v216
        %v218 = vpop.xlane.xlu0 %217
        %vm219 = vcmp.eq.f32.partialorder %v215, %v218
        %v220 = vsel %vm219, %v193, 16
        %v221 = vsel %vm182, %v220, 2147483647
        %v222 = vand.u32 %v221, 65535
        %v223 = vshra.s32 %v221, 16
        %v224 = vcvt.s32.f32 %v222
        %v225 = vcvt.s32.f32 %v223
        %226 = vmin.xlane.f32.xlu0 %v225
        %v227 = vpop.xlane.xlu0 %226
        %vm228 = vcmp.eq.f32.partialorder %v225, %v227
        %v229 = vsel %vm228, %v224, inf
        %230 = vmin.xlane.f32.xlu0 %v229
        %v231 = vpop.xlane.xlu0 %230
        %v232 = vcvt.f32.s32 %v231
        %v233 = vcvt.f32.s32 %v227
        %v234 = vshll.u32 %v233, 16
        %v235 = vadd.s32 %v234, %v232
        %vm236 = vcmp.eq.s32.totalorder %v193, %v235
        %v237 = vsel %vm236, -inf, %v215
        %v238 = vsel %vm182, %v237, -inf
        %239 = vmax.xlane.f32.xlu0 %v238
        %v240 = vpop.xlane.xlu0 %239
        %vm241 = vcmp.eq.f32.partialorder %v237, %v240
        %v242 = vsel %vm241, %v193, 16
        %v243 = vsel %vm182, %v242, 2147483647
        %v244 = vand.u32 %v243, 65535
        %v245 = vshra.s32 %v243, 16
        %v246 = vcvt.s32.f32 %v244
        %v247 = vcvt.s32.f32 %v245
        %248 = vmin.xlane.f32.xlu0 %v247
        %v249 = vpop.xlane.xlu0 %248
        %vm250 = vcmp.eq.f32.partialorder %v247, %v249
        %v251 = vsel %vm250, %v246, inf
        %252 = vmin.xlane.f32.xlu0 %v251
        %v253 = vpop.xlane.xlu0 %252
        %v254 = vcvt.f32.s32 %v253
        %v255 = vcvt.f32.s32 %v249
        %v256 = vshll.u32 %v255, 16
        %v257 = vadd.s32 %v256, %v254
        %vm258 = vcmp.eq.s32.totalorder %v193, %v257
        %v259 = vsel %vm258, -inf, %v237
        %v260 = vsel %vm182, %v259, -inf
        %261 = vmax.xlane.f32.xlu0 %v260
        %v262 = vpop.xlane.xlu0 %261
        %vm263 = vcmp.eq.f32.partialorder %v259, %v262
        %v264 = vsel %vm263, %v193, 16
        %v265 = vsel %vm182, %v264, 2147483647
        %v266 = vand.u32 %v265, 65535
        %v267 = vshra.s32 %v265, 16
        %v268 = vcvt.s32.f32 %v266
        %v269 = vcvt.s32.f32 %v267
        %270 = vmin.xlane.f32.xlu0 %v269
        %v271 = vpop.xlane.xlu0 %270
        %vm272 = vcmp.eq.f32.partialorder %v269, %v271
        %v273 = vsel %vm272, %v268, inf
        %274 = vmin.xlane.f32.xlu0 %v273
        %v275 = vpop.xlane.xlu0 %274
        %v276 = vcvt.f32.s32 %v275
        %v277 = vcvt.f32.s32 %v271
        %v278 = vshll.u32 %v277, 16
        %v279 = vadd.s32 %v278, %v276
        %v280 = vsel %vm214, 1, 0
        %vm281 = vcmp.eq.s32.totalorder %v280, 1
        %v282 = vsel %vm281, %v159, 0.0
        %v283 = vsel %vm182, %v282, 0.0
        %284 = vadd.xlane.f32.xlu0 %v283
        %v285 = vpop.xlane.xlu0 %284
        %v286 = vtanh.pop %v196
        %v287 = vmul.f32 %v285, %v286
        %v288 = vsel %vm236, 1, 0
        %vm289 = vcmp.eq.s32.totalorder %v288, 1
        %v290 = vsel %vm289, %v159, 0.0
        %v291 = vsel %vm182, %v290, 0.0
        %292 = vadd.xlane.f32.xlu0 %v291
        %v293 = vpop.xlane.xlu0 %292
        %v294 = vtanh.pop %v218
        %v295 = vmul.f32 %v293, %v294
        %v296 = vsel %vm258, 1, 0
        %vm297 = vcmp.eq.s32.totalorder %v296, 1
        %v298 = vsel %vm297, %v159, 0.0
        %v299 = vsel %vm182, %v298, 0.0
        %300 = vadd.xlane.f32.xlu0 %v299
        %v301 = vpop.xlane.xlu0 %300
        %v302 = vtanh.pop %v240
        %v303 = vmul.f32 %v301, %v302
        %vm304 = vcmp.eq.s32.totalorder %v193, %v279
        %v305 = vsel %vm304, 1, 0
        %vm306 = vcmp.eq.s32.totalorder %v305, 1
        %v307 = vsel %vm306, %v159, 0.0
        %v308 = vsel %vm182, %v307, 0.0
        %309 = vadd.xlane.f32.xlu0 %v308
        %v310 = vpop.xlane.xlu0 %309
        %v311 = vtanh.pop %v262
        %v312 = vmul.f32 %v310, %v311
        %v314 = vlaneseq
        %v315 = vshrl.u32 %v314, 7
        %v316 = vsub.s32 %v193, %v315
        %v317 = vrot.slane %v287, %v316
        %v320 = vlaneseq
        %v321 = vshrl.u32 %v320, 7
        %v322 = vsub.s32 %v193, %v321
        %v323 = vrot.slane %v295, %v322
        %v326 = vlaneseq
        %v327 = vshrl.u32 %v326, 7
        %v328 = vsub.s32 %v193, %v327
        %v329 = vrot.slane %v303, %v328
        %v332 = vlaneseq
        %v333 = vshrl.u32 %v332, 7
        %v334 = vsub.s32 %v193, %v333
        %v335 = vrot.slane %v312, %v334
        %vm337 = vcmask 1040384
        %v338 = vsel %vm337, %v317, %v323
        %vm339 = vcmask 1041408
        %v340 = vsel %vm339, %v338, %v329
        %vm341 = vcmask 1042432
        %v342 = vsel %vm341, %v340, %v335
        %vm343 = vcmask 60416
        %344 = vst.msk [vmem:[%s158] sm:$0xf] %vm343, %v342
        %s345 = sand.u32 %s74, 1
        %s346 = scalar_lea.sflag [#allocation4], %s345
        %s347 = sand.u32 %s74, 1
        %s348 = smul.addr %s347, 4
        %s349 = scalar_lea.vmem [#allocation5], %s348
        // Predicated region
        $region33: #{tpu_custom_call.1} parent=27 // pred_check
          %p350 = pneg %p84
        $region34: #{tpu_custom_call.1} parent=27 // pred_check_branch
          %352 = sbr.rel (%p350) target = $region36
        $region35: #{tpu_custom_call.1} parent=27 // pred_region
          %s354 = ssub.s32 64, 64
          %355 = vsyncadd %s346, %s354
          %s356 = smul.addr %s19, 64
          %s357 = scalar_lea.hbm %s2, %s356
          %s359 = sshll.u32 %s349, 4
          %s360 = int_to_ptr.vmem [resolvable:$true] %s359
          %362 = dma.vmem_to_hbm [thread:$0]  %s360, 64, %s357, %s346
        $region36: #{tpu_custom_call.1} parent=27 // pred_fallthru
          _
      $region28: #{tpu_custom_call.1} parent=5 // pred_fallthru
        _
      %p363 = scmp.le.s32.totalorder 2, %s14
      // Predicated region
      $region37: #{tpu_custom_call.1} parent=5 // pred_check
        %p364 = pneg %p363
      $region38: #{tpu_custom_call.1} parent=5 // pred_check_branch
        %366 = sbr.rel (%p364) target = $region40
      $region39: #{tpu_custom_call.1} parent=5 // pred_region
        %s367 = ssub.s32 %s14, 2
        // Predicated region
        $region41: #{tpu_custom_call.1} parent=39 // pred_check
          %p368 = pneg %p90
        $region42: #{tpu_custom_call.1} parent=39 // pred_check_branch
          %370 = sbr.rel (%p368) target = $region44
        $region43: #{tpu_custom_call.1} parent=39 // pred_region
          %s371 = sand.u32 %s75, 1
          %s372 = scalar_lea.sflag [#allocation4], %s371
          %s373 = sand.u32 %s75, 1
          %s374 = smul.addr %s373, 4
          %s375 = scalar_lea.vmem [#allocation5], %s374
          %376 = dma.done %s372, 64
        $region44: #{tpu_custom_call.1} parent=39 // pred_fallthru
          _
      $region40: #{tpu_custom_call.1} parent=5 // pred_fallthru
        _
    $region6: #{tpu_custom_call.1} parent=1 // loop_footer
      %s18 = sadd.s32 1, %s14
    $region7: #{tpu_custom_call.1} parent=1 // loop_footer_branch
      %13 = sbr.rel target = $region3
    $region8: #{tpu_custom_call.1} parent=1 // loop_exit
      _
    %377 = vsyncpa [#allocation3], 1
    %s378 = scalar_lea.sflag [#allocation3], 1
    %379 = vsyncpa %s378, 1
    %380 = vsyncpa [#allocation4], 1
    %s381 = scalar_lea.sflag [#allocation4], 1
    %382 = vsyncpa %s381, 1

</llo_original>
